<compile_context>
chip_gen: v7x
topology: tpu7x:2x2x1
jax: 0.10.0
libtpu: 0.0.40
codegen_flags: <defaults>
</compile_context>

<pallas_src>
import functools
import itertools
import math

import jax
import jax.numpy as jnp
import numpy as np
from jax.experimental import pallas as pl
from jax.experimental.pallas import tpu as pltpu


class FourierBasis:
    """Parameter holder matching neuroPMD's FourierBasis (no learnable params)."""

    def __init__(self, n_basis: int = 3, period: float = 2.0 * math.pi):
        self.period = float(period)
        self.n_basis = n_basis + (1 - n_basis % 2)        # force odd
        self.K = (self.n_basis - 1) // 2
        self.omega = 2.0 * math.pi / self.period
        self.norm_denom = math.sqrt(self.period / 2.0)
        self.inv_norm = 1.0 / self.norm_denom
        self.const_val = 1.0 / (math.sqrt(2.0) * self.norm_denom)


def _tp_fourier_kernel(xs_ref, o_ref, *, dim_params, n_basis_total):
    """xs_ref: (dim_domain, tile_n) points on lanes; o_ref: (tile_n, n_basis_total)."""
    tn = xs_ref.shape[-1]
    d = len(dim_params)
    out_dt = o_ref.dtype
    f32 = jnp.float32

    Ks = [p[0] for p in dim_params]
    omegas = [p[1] for p in dim_params]
    inv_norms = [p[2] for p in dim_params]
    inv_sqrt2 = 1.0 / math.sqrt(2.0)
    # Fold every per-dimension 1/norm factor into ONE compile-time scalar.
    global_norm = 1.0
    for v in inv_norms:
        global_norm *= v

    # ---- Trig: one dense (d, tn) sin/cos of the base angle, higher harmonics via
    # the angle-addition recurrence (re-seeded from exact sin/cos every 16).
    base_rows = [xs_ref[j:j + 1, :].astype(f32) * omegas[j] for j in range(d)]
    base = jnp.concatenate(base_rows, axis=0) if d > 1 else base_rows[0]   # (d, tn)
    max_k = max(Ks)
    sin_k, cos_k = [], []
    if max_k > 0:
        s1, c1 = jnp.sin(base), jnp.cos(base)
        sin_k.append(s1)
        cos_k.append(c1)
        for k in range(2, max_k + 1):
            if k % 16 == 0:                               # bound recurrence drift
                sk, ck = jnp.sin(float(k) * base), jnp.cos(float(k) * base)
            else:
                sp, cp = sin_k[-1], cos_k[-1]
                sk = sp * c1 + cp * s1
                ck = cp * c1 - sp * s1
            sin_k.append(sk)
            cos_k.append(ck)

    # dim_rows[j][idx] = (1, tn) un-normalized basis row; idx 0 (const) stays a
    # compile-time scalar (handled via `scale` below), never a vector.
    dim_rows = []
    for j in range(d):
        K = Ks[j]
        rows = [None]
        rows += [sin_k[k][j:j + 1, :] for k in range(K)]
        rows += [cos_k[k][j:j + 1, :] for k in range(K)]
        dim_rows.append(rows)

    # ---- Last-dimension basis block (n_last, tn), with the global norm folded in.
    K_last = Ks[-1]
    n_last = 1 + 2 * K_last
    last_rows = [jnp.full((1, tn), inv_sqrt2, f32)] + dim_rows[-1][1:]
    last_block = jnp.concatenate(last_rows, axis=0) if n_last > 1 else last_rows[0]
    if global_norm != 1.0:
        last_block = last_block * global_norm             # (n_last, tn)

    # ---- Tensor product: one (n_last, tn) slab per outer multi-index in 'ij'
    # meshgrid order (last dim fastest); const outer factors fold to scalars.
    pieces = []
    for combo in itertools.product(*[range(1 + 2 * Ks[j]) for j in range(d - 1)]):
        scale = 1.0
        vec = None
        for j, idx in enumerate(combo):
            if idx == 0:
                scale *= inv_sqrt2
            else:
                r = dim_rows[j][idx]
                vec = r if vec is None else vec * r       # (1, tn)
        if vec is None:
            pieces.append(last_block if scale == 1.0 else last_block * scale)
        else:
            if scale != 1.0:
                vec = vec * scale
            pieces.append(vec * last_block)               # sublane-broadcast multiply

    # Pad the row count to a multiple of 8 so the transpose sees aligned shapes.
    rows_pad = ((n_basis_total + 7) // 8) * 8
    if rows_pad != n_basis_total:
        pieces.append(jnp.zeros((rows_pad - n_basis_total, tn), f32))
    full = jnp.concatenate(pieces, axis=0) if len(pieces) > 1 else pieces[0]

    # ---- Single in-kernel transpose (XLU) -> point-major tile; one store, one
    # cast.  No extra XLA transpose pass over the (dominant) output array.
    full_t = full.T                                       # (tn, rows_pad)
    o_ref[...] = full_t[:, :n_basis_total].astype(out_dt)


def _choose_tile_n(n_points: int, n_rows: int) -> int:
    """Point-tile width (lane dim, multiple of 128)."""
    rows_pad = ((n_rows + 7) // 8) * 8
    lane_pad = ((n_rows + 127) // 128) * 128
    # Rough per-lane VMEM footprint: double-buffered output block + transposed
    # value (lane-padded), plus ~4 lane-dense f32 intermediates (full block,
    # slabs, trig temps).  Keep the total around <= 20 MiB so the working set
    # stays below the scoped-VMEM default on every generation (incl. v7x).
    per_lane = 4 * (3 * lane_pad + 4 * rows_pad)
    tn = (20 * 1024 * 1024) // per_lane
    tn = max(128, min(8192, (tn // 128) * 128))
    # Don't tile beyond the (128-padded) number of points.
    np128 = ((n_points + 127) // 128) * 128
    tn = min(tn, np128)
    # Keep >= 4 grid steps when possible (>= 2 per TensorCore on v7x), else >= 2,
    # so the "parallel" grid axis can shard across cores (harmless on v5e/v6e).
    for parts in (4, 2):
        if np128 >= parts * 128:
            chunk = ((-(-n_points // parts) + 127) // 128) * 128
            tn = min(tn, chunk)
            break
    return max(128, tn)


class FullTensorProductFourierBasis:
    """JAX/Pallas port of FullTensorProductFourierBasisPyT (forward only)."""

    def __init__(self, basis_list):
        self.basis_list = list(basis_list)
        self.dim_domain = len(self.basis_list)
        self.n_basis_per_dim = [b.n_basis for b in self.basis_list]
        self.n_basis_total = int(np.prod(self.n_basis_per_dim))
        self._dim_params = tuple(
            (b.K, b.omega, b.inv_norm) for b in self.basis_list)

    def __call__(self, eval_points: jax.Array) -> jax.Array:
        if eval_points.ndim != 2:
            raise ValueError("eval_points must be (n_points, dim_domain)")
        n_points, dim = eval_points.shape
        if dim != self.dim_domain:
            raise ValueError(
                f"Expected points of dimension {self.dim_domain}, but got {dim}.")

        dtype = eval_points.dtype
        b_total = self.n_basis_total
        tn = _choose_tile_n(n_points, b_total)
        n_pad = pl.cdiv(n_points, tn) * tn

        # (dim_domain, n_pad): points on the lane axis (tiny vs. the output, so the
        # pad + transpose of the *input* is negligible); the padded tail rows of
        # the output are clipped by Pallas on writeback.
        xs = jnp.pad(eval_points.T, ((0, 0), (0, n_pad - n_points)))

        kernel = functools.partial(
            _tp_fourier_kernel, dim_params=self._dim_params, n_basis_total=b_total)

        return pl.pallas_call(
            kernel,
            out_shape=jax.ShapeDtypeStruct((n_points, b_total), dtype),
            grid_spec=pltpu.PrefetchScalarGridSpec(
                num_scalar_prefetch=0,
                grid=(n_pad // tn,),
                in_specs=[pl.BlockSpec((dim, tn), lambda i: (0, i))],
                out_specs=pl.BlockSpec((tn, b_total), lambda i: (i, 0)),
            ),
            compiler_params=pltpu.CompilerParams(
                dimension_semantics=("parallel",),
                vmem_limit_bytes=40 * 1024 * 1024,
            ),
        )(xs)


# ------------------------- pure-JAX reference (verification) ------------------
def _fourier_basis_eval_ref(basis: FourierBasis, x: jax.Array) -> jax.Array:
    """Transcription of FourierBasis.forward(x).T -> (n_basis, n_points)."""
    K = basis.K
    seq = 1.0 + jnp.arange(K, dtype=jnp.float32)
    phase = basis.omega * seq[:, None] * x[None, :]
    main = jnp.concatenate([jnp.sin(phase), jnp.cos(phase)], axis=0) / basis.norm_denom
    const = jnp.full((1, x.shape[0]), basis.const_val, x.dtype)
    return jnp.concatenate([const, main], axis=0)


def full_tp_fourier_reference(basis_list, eval_points: jax.Array) -> jax.Array:
    """Pure-JAX transcription of FullTensorProductFourierBasisPyT.forward."""
    n_points, d = eval_points.shape
    ns = [b.n_basis for b in basis_list]
    b_total = int(np.prod(ns))
    evals = [_fourier_basis_eval_ref(b, eval_points[:, i])
             for i, b in enumerate(basis_list)]
    grids = jnp.meshgrid(*[jnp.arange(n) for n in ns], indexing="ij")
    indices = jnp.stack(grids, axis=-1).reshape(-1, d)
    result = jnp.ones((b_total, n_points), eval_points.dtype)
    for i in range(d):
        result = result * evals[i][indices[:, i]]
    return result.T


if __name__ == "__main__":
    key = jax.random.PRNGKey(0)
    n_points = 200                                           # exercises padding/tiling
    basis_list = [FourierBasis(5), FourierBasis(3), FourierBasis(5)]   # 5*3*5 = 75

    module = FullTensorProductFourierBasis(basis_list)
    eval_points = jax.random.uniform(
        key, (n_points, module.dim_domain), dtype=jnp.float32,
        minval=-math.pi, maxval=math.pi,
    )

    out = module(eval_points)
    out = jax.block_until_ready(out)

    ref = full_tp_fourier_reference(basis_list, eval_points)
    assert out.shape == (n_points, module.n_basis_total), out.shape
    assert jnp.allclose(out, ref, atol=1e-5, rtol=1e-5), float(
        jnp.max(jnp.abs(out - ref)))

    print("KERNEL_OK")
</pallas_src>

<mosaic_0001>
module attributes {stable_mosaic.version = 11 : i64} {
  func.func @_tp_fourier_kernel(%arg0: i32, %arg1: memref<3x128xf32, #tpu.memory_space<vmem>>, %arg2: memref<128x75xf32, #tpu.memory_space<vmem>>) attributes {dimension_semantics = [#tpu.dimension_semantics<parallel>], iteration_bounds = array<i64: 2>, scalar_prefetch = 0 : i64, scratch_operands = 0 : i64, tpu.core_type = #tpu.core_type<tc>, window_params = [{transform_indices = @transform_0, window_bounds = array<i64: 3, 128>}, {transform_indices = @transform_1, window_bounds = array<i64: 128, 75>}]} {
    %c0 = arith.constant 0 : index
    %c0_0 = arith.constant 0 : index
    %0 = vector.load %arg1[%c0, %c0_0] : memref<3x128xf32, #tpu.memory_space<vmem>>, vector<1x128xf32>
    %cst = arith.constant 1.000000e+00 : f32
    %1 = vector.broadcast %cst : f32 to vector<1x128xf32>
    %2 = arith.mulf %0, %1 : vector<1x128xf32>
    %c1 = arith.constant 1 : index
    %c0_1 = arith.constant 0 : index
    %3 = vector.load %arg1[%c1, %c0_1] : memref<3x128xf32, #tpu.memory_space<vmem>>, vector<1x128xf32>
    %cst_2 = arith.constant 1.000000e+00 : f32
    %4 = vector.broadcast %cst_2 : f32 to vector<1x128xf32>
    %5 = arith.mulf %3, %4 : vector<1x128xf32>
    %c2 = arith.constant 2 : index
    %c0_3 = arith.constant 0 : index
    %6 = vector.load %arg1[%c2, %c0_3] : memref<3x128xf32, #tpu.memory_space<vmem>>, vector<1x128xf32>
    %cst_4 = arith.constant 1.000000e+00 : f32
    %7 = vector.broadcast %cst_4 : f32 to vector<1x128xf32>
    %8 = arith.mulf %6, %7 : vector<1x128xf32>
    %9 = tpu.concatenate %2, %5, %8 in 0 : vector<1x128xf32>, vector<1x128xf32>, vector<1x128xf32> -> vector<3x128xf32>
    %10 = math.sin %9 : vector<3x128xf32>
    %11 = math.cos %9 : vector<3x128xf32>
    %12 = arith.mulf %10, %11 : vector<3x128xf32>
    %13 = arith.mulf %11, %10 : vector<3x128xf32>
    %14 = arith.addf %12, %13 : vector<3x128xf32>
    %15 = arith.mulf %11, %11 : vector<3x128xf32>
    %16 = arith.mulf %10, %10 : vector<3x128xf32>
    %17 = arith.subf %15, %16 : vector<3x128xf32>
    %18 = vector.extract_strided_slice %10 {offsets = [0, 0], sizes = [1, 128], strides = [1, 1]} : vector<3x128xf32> to vector<1x128xf32>
    %19 = vector.extract_strided_slice %14 {offsets = [0, 0], sizes = [1, 128], strides = [1, 1]} : vector<3x128xf32> to vector<1x128xf32>
    %20 = vector.extract_strided_slice %11 {offsets = [0, 0], sizes = [1, 128], strides = [1, 1]} : vector<3x128xf32> to vector<1x128xf32>
    %21 = vector.extract_strided_slice %17 {offsets = [0, 0], sizes = [1, 128], strides = [1, 1]} : vector<3x128xf32> to vector<1x128xf32>
    %22 = vector.extract_strided_slice %10 {offsets = [1, 0], sizes = [1, 128], strides = [1, 1]} : vector<3x128xf32> to vector<1x128xf32>
    %23 = vector.extract_strided_slice %11 {offsets = [1, 0], sizes = [1, 128], strides = [1, 1]} : vector<3x128xf32> to vector<1x128xf32>
    %24 = vector.extract_strided_slice %10 {offsets = [2, 0], sizes = [1, 128], strides = [1, 1]} : vector<3x128xf32> to vector<1x128xf32>
    %25 = vector.extract_strided_slice %14 {offsets = [2, 0], sizes = [1, 128], strides = [1, 1]} : vector<3x128xf32> to vector<1x128xf32>
    %26 = vector.extract_strided_slice %11 {offsets = [2, 0], sizes = [1, 128], strides = [1, 1]} : vector<3x128xf32> to vector<1x128xf32>
    %27 = vector.extract_strided_slice %17 {offsets = [2, 0], sizes = [1, 128], strides = [1, 1]} : vector<3x128xf32> to vector<1x128xf32>
    %cst_5 = arith.constant 0.707106769 : f32
    %28 = vector.broadcast %cst_5 : f32 to vector<1x128xf32>
    %29 = tpu.concatenate %28, %24, %25, %26, %27 in 0 : vector<1x128xf32>, vector<1x128xf32>, vector<1x128xf32>, vector<1x128xf32>, vector<1x128xf32> -> vector<5x128xf32>
    %cst_6 = arith.constant 0.179587126 : f32
    %30 = vector.broadcast %cst_6 : f32 to vector<5x128xf32>
    %31 = arith.mulf %29, %30 : vector<5x128xf32>
    %cst_7 = arith.constant 5.000000e-01 : f32
    %32 = vector.broadcast %cst_7 : f32 to vector<5x128xf32>
    %33 = arith.mulf %31, %32 : vector<5x128xf32>
    %cst_8 = arith.constant 0.707106769 : f32
    %34 = vector.broadcast %cst_8 : f32 to vector<1x128xf32>
    %35 = arith.mulf %22, %34 : vector<1x128xf32>
    %36 = vector.broadcast %35 : vector<1x128xf32> to vector<5x128xf32>
    %37 = arith.mulf %36, %31 : vector<5x128xf32>
    %cst_9 = arith.constant 0.707106769 : f32
    %38 = vector.broadcast %cst_9 : f32 to vector<1x128xf32>
    %39 = arith.mulf %23, %38 : vector<1x128xf32>
    %40 = vector.broadcast %39 : vector<1x128xf32> to vector<5x128xf32>
    %41 = arith.mulf %40, %31 : vector<5x128xf32>
    %cst_10 = arith.constant 0.707106769 : f32
    %42 = vector.broadcast %cst_10 : f32 to vector<1x128xf32>
    %43 = arith.mulf %18, %42 : vector<1x128xf32>
    %44 = vector.broadcast %43 : vector<1x128xf32> to vector<5x128xf32>
    %45 = arith.mulf %44, %31 : vector<5x128xf32>
    %46 = arith.mulf %18, %22 : vector<1x128xf32>
    %47 = vector.broadcast %46 : vector<1x128xf32> to vector<5x128xf32>
    %48 = arith.mulf %47, %31 : vector<5x128xf32>
    %49 = arith.mulf %18, %23 : vector<1x128xf32>
    %50 = vector.broadcast %49 : vector<1x128xf32> to vector<5x128xf32>
    %51 = arith.mulf %50, %31 : vector<5x128xf32>
    %cst_11 = arith.constant 0.707106769 : f32
    %52 = vector.broadcast %cst_11 : f32 to vector<1x128xf32>
    %53 = arith.mulf %19, %52 : vector<1x128xf32>
    %54 = vector.broadcast %53 : vector<1x128xf32> to vector<5x128xf32>
    %55 = arith.mulf %54, %31 : vector<5x128xf32>
    %56 = arith.mulf %19, %22 : vector<1x128xf32>
    %57 = vector.broadcast %56 : vector<1x128xf32> to vector<5x128xf32>
    %58 = arith.mulf %57, %31 : vector<5x128xf32>
    %59 = arith.mulf %19, %23 : vector<1x128xf32>
    %60 = vector.broadcast %59 : vector<1x128xf32> to vector<5x128xf32>
    %61 = arith.mulf %60, %31 : vector<5x128xf32>
    %cst_12 = arith.constant 0.707106769 : f32
    %62 = vector.broadcast %cst_12 : f32 to vector<1x128xf32>
    %63 = arith.mulf %20, %62 : vector<1x128xf32>
    %64 = vector.broadcast %63 : vector<1x128xf32> to vector<5x128xf32>
    %65 = arith.mulf %64, %31 : vector<5x128xf32>
    %66 = arith.mulf %20, %22 : vector<1x128xf32>
    %67 = vector.broadcast %66 : vector<1x128xf32> to vector<5x128xf32>
    %68 = arith.mulf %67, %31 : vector<5x128xf32>
    %69 = arith.mulf %20, %23 : vector<1x128xf32>
    %70 = vector.broadcast %69 : vector<1x128xf32> to vector<5x128xf32>
    %71 = arith.mulf %70, %31 : vector<5x128xf32>
    %cst_13 = arith.constant 0.707106769 : f32
    %72 = vector.broadcast %cst_13 : f32 to vector<1x128xf32>
    %73 = arith.mulf %21, %72 : vector<1x128xf32>
    %74 = vector.broadcast %73 : vector<1x128xf32> to vector<5x128xf32>
    %75 = arith.mulf %74, %31 : vector<5x128xf32>
    %76 = arith.mulf %21, %22 : vector<1x128xf32>
    %77 = vector.broadcast %76 : vector<1x128xf32> to vector<5x128xf32>
    %78 = arith.mulf %77, %31 : vector<5x128xf32>
    %79 = arith.mulf %21, %23 : vector<1x128xf32>
    %80 = vector.broadcast %79 : vector<1x128xf32> to vector<5x128xf32>
    %81 = arith.mulf %80, %31 : vector<5x128xf32>
    %cst_14 = arith.constant 0.000000e+00 : f32
    %82 = vector.broadcast %cst_14 : f32 to vector<5x128xf32>
    %83 = tpu.concatenate %33, %37, %41, %45, %48, %51, %55, %58, %61, %65, %68, %71, %75, %78, %81, %82 in 0 : vector<5x128xf32>, vector<5x128xf32>, vector<5x128xf32>, vector<5x128xf32>, vector<5x128xf32>, vector<5x128xf32>, vector<5x128xf32>, vector<5x128xf32>, vector<5x128xf32>, vector<5x128xf32>, vector<5x128xf32>, vector<5x128xf32>, vector<5x128xf32>, vector<5x128xf32>, vector<5x128xf32>, vector<5x128xf32> -> vector<80x128xf32>
    %84 = tpu.transpose %83, [1, 0] : vector<80x128xf32> -> vector<128x80xf32>
    %85 = vector.extract_strided_slice %84 {offsets = [0, 0], sizes = [128, 75], strides = [1, 1]} : vector<128x80xf32> to vector<128x75xf32>
    %c0_15 = arith.constant 0 : index
    %c0_16 = arith.constant 0 : index
    %86 = vector.load %arg2[%c0_15, %c0_16] : memref<128x75xf32, #tpu.memory_space<vmem>>, vector<128x75xf32>
    tpu.vector_store %arg2[%c0_15, %c0_16], %85 {strides = array<i32>} : memref<128x75xf32, #tpu.memory_space<vmem>>, vector<128x75xf32>,
    return
  }
  func.func @transform_0(%arg0: i32) -> (i32, i32) {
    %c0_i32 = arith.constant 0 : i32
    %c0_i32_0 = arith.constant 0 : i32
    return %c0_i32, %arg0 : i32, i32
  }
  func.func @transform_1(%arg0: i32) -> (i32, i32) {
    %c0_i32 = arith.constant 0 : i32
    %c0_i32_0 = arith.constant 0 : i32
    return %arg0, %c0_i32 : i32, i32
  }
}

</mosaic_0001>

<llo_original>
// kernel: tpu_custom_call.1
$region0: #{tpu_custom_call.1}
  #allocation0 [shape = 'u32[]', space=smem, size = 0x4, offset = 0x4, fixed_abs, tag = 'smem constant byte address 0x4 - core index']
  #allocation1 [shape = 'u32[144,128]{1,0:T(1,128)}', space=vmem, size = 0x12000, scoped, tag = 'internal scratch']
  %s0 = inlined_call_operand.hbm [shape: f32[3,256], index: 0, kind: input, shape index: {}]
  %s1 = inlined_call_operand.vmem [shape: f32[200,75], index: 1, kind: output, shape index: {}]
  %s2 = sld [smem:[#allocation0]]
  $region89: #{tpu_custom_call.1} parent=0
    _
  %s4 = ssub.s32 1, %s2
  %s5 = scalar_select 0, %s4, %s2
  $region1: #{tpu_custom_call.1} parent=0
    #allocation2 [shape = 'u8[4096]{0}', space=vmem, size = 0x1000, scoped, tag = 'input window, operand 0']
    #allocation3 [shape = 's32[2]{0}', space=sflag, size = 0x8, scoped, tag = 'scoped memory for tpu_custom_call.1']
    #allocation4 [shape = 'u8[131072]{0}', space=vmem, size = 0x20000, scoped, tag = 'output window, operand 0']
    %6 = vsyncpa [#allocation3], 0
    %s7 = scalar_lea.sflag [#allocation3], 1
    %8 = vsyncpa %s7, 0
    loop: start=0, step=1, limit=4
    $region2: #{tpu_custom_call.1} parent=1 // loop_pre_header
      _
    $region3: #{tpu_custom_call.1} parent=1 // loop_header
      %s10 = sphi 0, %s14
      %p11 = scmp.ge.s32.totalorder %s10, 4
      %s20 = sphi 0, %s22
      %s23 = sphi 0, %s20
      %s24 = sphi 0, %s23
      %s40 = sphi 0, %s24
      %s46 = sphi 0, %s48
      %s49 = sphi 0, %s46
      %s50 = sphi 0, %s49
      %s66 = sphi 0, %s50
    $region4: #{tpu_custom_call.1} parent=1 // loop_header_branch
      %13 = sbr.rel (%p11) target = $region8
    $region5: #{tpu_custom_call.1} parent=1 // loop_body
      %s15 = ssub.s32 %s10, 1
      %s16 = ssub.s32 %s10, 2
      %s17 = sadd.s32 %s10, 1
      %s18 = ssub.s32 %s10, %s17
      %p19 = scmp.eq.s32.totalorder %s18, 0
      %s21 = sadd.s32 %s20, 1
      %s22 = scalar_select %p19, %s20, %s21
      %p25 = pneg %p19
      %p26 = scmp.eq.s32.totalorder %s10, 1
      %p27 = por %p25, %p26
      %p28 = scmp.ne.s32.totalorder %s20, %s23
      %p29 = scmp.eq.s32.totalorder %s10, 0
      %p30 = por %p28, %p29
      %p31 = scmp.ne.s32.totalorder %s20, %s23
      %p32 = scmp.eq.s32.totalorder %s15, 1
      %p33 = por %p31, %p32
      %p34 = scmp.ne.s32.totalorder %s23, %s24
      %p35 = scmp.eq.s32.totalorder %s15, 0
      %p36 = por %p34, %p35
      %p37 = scmp.ne.s32.totalorder %s23, %s24
      %p38 = scmp.eq.s32.totalorder %s16, 1
      %p39 = por %p37, %p38
      %p41 = scmp.ne.s32.totalorder %s24, %s40
      %p42 = scmp.eq.s32.totalorder %s16, 0
      %p43 = por %p41, %p42
      %s44 = ssub.s32 %s10, %s17
      %p45 = scmp.eq.s32.totalorder %s44, 0
      %s47 = sadd.s32 %s46, 1
      %s48 = scalar_select %p45, %s46, %s47
      %p51 = pneg %p45
      %p52 = scmp.eq.s32.totalorder %s10, 1
      %p53 = por %p51, %p52
      %p54 = scmp.ne.s32.totalorder %s46, %s49
      %p55 = scmp.eq.s32.totalorder %s10, 0
      %p56 = por %p54, %p55
      %p57 = scmp.ne.s32.totalorder %s46, %s49
      %p58 = scmp.eq.s32.totalorder %s15, 1
      %p59 = por %p57, %p58
      %p60 = scmp.ne.s32.totalorder %s49, %s50
      %p61 = scmp.eq.s32.totalorder %s15, 0
      %p62 = por %p60, %p61
      %p63 = scmp.ne.s32.totalorder %s49, %s50
      %p64 = scmp.eq.s32.totalorder %s16, 1
      %p65 = por %p63, %p64
      %p67 = scmp.ne.s32.totalorder %s50, %s66
      %p68 = scmp.eq.s32.totalorder %s16, 0
      %p69 = por %p67, %p68
      %p70 = scmp.le.s32.totalorder 1, %s10
      %p71 = scmp.lt.s32.totalorder %s10, 3
      %p72 = pnand %p70, %p71
      %p73 = pneg %p72
      // Predicated region
      $region9: #{tpu_custom_call.1} parent=5 // pred_check
        _
      $region10: #{tpu_custom_call.1} parent=5 // pred_check_branch
        %75 = sbr.rel (%p72) target = $region12
      $region11: #{tpu_custom_call.1} parent=5 // pred_region
        %s76 = ssub.s32 %s10, 1
      $region12: #{tpu_custom_call.1} parent=5 // pred_fallthru
        _
      %p77 = scmp.lt.s32.totalorder %s10, 2
      // Predicated region
      $region13: #{tpu_custom_call.1} parent=5 // pred_check
        %p78 = pneg %p77
      $region14: #{tpu_custom_call.1} parent=5 // pred_check_branch
        %80 = sbr.rel (%p78) target = $region16
      $region15: #{tpu_custom_call.1} parent=5 // pred_region
        // Predicated region
        $region17: #{tpu_custom_call.1} parent=15 // pred_check
          %p81 = pneg %p30
        $region18: #{tpu_custom_call.1} parent=15 // pred_check_branch
          %83 = sbr.rel (%p81) target = $region20
        $region19: #{tpu_custom_call.1} parent=15 // pred_region
          %s84 = sand.u32 %s20, 1
          %s85 = scalar_lea.sflag [#allocation3], %s84
          %s86 = sand.u32 %s20, 1
          %s87 = smul.addr %s86, 4
          %s88 = scalar_lea.vmem [#allocation2], %s87
          %s90 = ssub.s32 64, 64
          %91 = vsyncadd %s85, %s90
          %s92 = smul.addr %s10, 64
          %s93 = scalar_lea.hbm %s0, %s92
          %s95 = sshll.u32 %s88, 4
          %s96 = int_to_ptr.vmem [resolvable:$true] %s95
          %98 = dma.hbm_to_vmem [thread:$0]  %s93, 64, %s96, %s85
        $region20: #{tpu_custom_call.1} parent=15 // pred_fallthru
          _
      $region16: #{tpu_custom_call.1} parent=5 // pred_fallthru
        _
      %p99 = scmp.le.s32.totalorder 1, %s10
      %p100 = scmp.lt.s32.totalorder %s10, 3
      %p101 = pnand %p99, %p100
      %p102 = pneg %p101
      // Predicated region
      $region21: #{tpu_custom_call.1} parent=5 // pred_check
        _
      $region22: #{tpu_custom_call.1} parent=5 // pred_check_branch
        %104 = sbr.rel (%p101) target = $region24
      $region23: #{tpu_custom_call.1} parent=5 // pred_region
        %s105 = ssub.s32 %s10, 1
        %s106 = sand.u32 %s23, 1
        %s107 = scalar_lea.sflag [#allocation3], %s106
        %s108 = sand.u32 %s23, 1
        %s109 = smul.addr %s108, 4
        %s110 = scalar_lea.vmem [#allocation2], %s109
        // Predicated region
        $region25: #{tpu_custom_call.1} parent=23 // pred_check
          %p111 = pneg %p36
        $region26: #{tpu_custom_call.1} parent=23 // pred_check_branch
          %113 = sbr.rel (%p111) target = $region28
        $region27: #{tpu_custom_call.1} parent=23 // pred_region
          %114 = dma.done %s107, 64
        $region28: #{tpu_custom_call.1} parent=23 // pred_fallthru
          _
        %s115 = sand.u32 %s23, 1
        %s116 = scalar_lea.sflag [#allocation3], %s115
        %s117 = sand.u32 %s23, 1
        %s118 = smul.addr %s117, 4
        %s119 = scalar_lea.vmem [#allocation2], %s118
        %p120 = pneg %p36
        %p121 = pneg %p33
        %p122 = pneg %p62
        %p123 = pneg %p59
        %s124 = sand.u32 %s49, 1
        %s125 = sand.u32 %s49, 1
        %s126 = smul.addr %s125, 128
        %s127 = scalar_lea.vmem [#allocation4], %s126
        %s128 = smul.u32 16, %s15
        %s129 = ssub.s32 25, %s128
        %p130 = scmp.lt.s32.totalorder %s129, 16
        %s131 = scalar_select %p130, %s129, 16
        %s132 = smul.u32 128, %s131
        %v133 = vld [vmem:[%s110] sm:$0x1]
        %v134 = vld [vmem:[%s110 + $0x1] sm:$0x1]
        %v135 = vld [vmem:[%s110 + $0x2] sm:$0x1]
        %v137 = vrot.slane %v134, 7
        %v140 = vrot.slane %v135, 6
        %vm142 = vcmask 1040384
        %v143 = vsel %vm142, %v133, %v137
        %vm144 = vcmask 1041408
        %v145 = vsel %vm144, %v143, %v140
        %v146 = vand.u32 2147483647, %v145
        %vm147 = vcmp.le.f32.partialorder %v146, 0.7853982
        %vm148 = vcmp.lt.s32.totalorder %v145, 0
        %v149 = vand.u32 %v145, 2139095040
        %v150 = vshrl.u32 %v149, 23
        %v151 = vsub.s32 %v150, 127
        %v152 = vand.u32 2147483647, %v145
        %v153 = vand.u32 %v152, 8388607
        %v154 = vor.u32 %v153, 8388608
        %v155 = vsub.s32 0, %v154
        %v156 = vadd.s32 %v151, 1
        %vm157 = vcmp.gt.s32.totalorder %v156, 0
        %v158 = vsel %vm157, %v156, 0
        %v159 = vshrl.u32 %v158, 5
        %v160 = vand.u32 %v158, 31
        %v161 = vsub.s32 32, %v160
        %v162 = vshrl.u32 683565275, %v161
        %v163 = vshll.u32 683565275, %v160
        %v164 = vshrl.u32 2475754826, %v161
        %v165 = vor.u32 %v163, %v164
        %v166 = vshll.u32 2475754826, %v160
        %v167 = vshrl.u32 2131351028, %v161
        %v168 = vor.u32 %v166, %v167
        %v169 = vshll.u32 2131351028, %v160
        %v170 = vshrl.u32 2102212464, %v161
        %v171 = vor.u32 %v169, %v170
        %v172 = vshll.u32 2102212464, %v160
        %v173 = vshrl.u32 920167782, %v161
        %v174 = vor.u32 %v172, %v173
        %v175 = vshll.u32 920167782, %v160
        %v176 = vshrl.u32 1326507024, %v161
        %v177 = vor.u32 %v175, %v176
        %vm178 = vcmp.lt.s32.totalorder %v159, 1
        %vm179 = vcmp.lt.s32.totalorder %v159, 2
        %vm180 = vcmp.lt.s32.totalorder %v159, 3
        %vm181 = vcmp.lt.s32.totalorder %v159, 4
        %v182 = vsel %vm178, %v162, %v165
        %v183 = vsel %vm181, %v171, 2102212464
        %v184 = vsel %vm180, %v168, %v183
        %v185 = vsel %vm179, %v182, %v184
        %v186 = vsel %vm178, %v165, %v168
        %v187 = vsel %vm181, %v174, 920167782
        %v188 = vsel %vm180, %v171, %v187
        %v189 = vsel %vm179, %v186, %v188
        %v190 = vsel %vm178, %v168, %v171
        %v191 = vsel %vm181, %v177, 1326507024
        %v192 = vsel %vm180, %v174, %v191
        %v193 = vsel %vm179, %v190, %v192
        %v194 = vshll.u32 %v154, 8
        %v195 = vmul.u32.u64.compose %v194, %v193
        %v196 = vextract.low.u32 %v195
        %v197 = vextract.high.u32 %v195
        %v198 = vmul.u32.u64.compose %v194, %v189
        %v199 = vextract.low.u32 %v198
        %v200 = vextract.high.u32 %v198
        %v201 = vmul.u32 %v194, %v185
        %v202 = vadd.s32 %v197, %v199
        %vm203 = vc.u32 %v197, %v199
        %v204 = vadd.s32 %v200, 1
        %v205 = vsel %vm203, %v204, %v200
        %v206 = vadd.s32 %v201, %v205
        %v207 = vadd.s32 %v206, 536870912
        %v208 = vshrl.u32 %v207, 30
        %v209 = vshll.u32 %v208, 30
        %v210 = vsub.s32 %v206, %v209
        %vm211 = vcmp.lt.s32.totalorder %v210, 0
        %v212 = vsub.s32 0, %v210
        %v213 = vsel %vm211, %v212, %v210
        %v214 = vclz %v213
        %v215 = vsub.s32 %v214, 2
        %vm216 = vcmp.gt.s32.totalorder 0, %v215
        %v217 = vsel %vm216, 0, %v215
        %v218 = vsub.s32 32, %v217
        %v219 = vshll.u32 %v210, %v217
        %v220 = vshrl.u32 %v202, %v218
        %v221 = vor.u32 %v219, %v220
        %v222 = vsub.s32 4294967266, %v217
        %v223 = vadd.s32 %v222, 127
        %v224 = vshll.u32 %v223, 23
        %v225 = vor.u32 4788187, %v224
        %v226 = vand.u32 2147483647, %v225
        %v228 = vcvt.s32.f32 %v221
        %v229 = vmul.f32 %v228, %v226
        %v230 = vxor.u32 %v229, 2147483648
        %v231 = vsel %vm148, %v230, %v229
        %v232 = vsub.s32 4, %v208
        %v233 = vsel %vm148, %v232, %v208
        %v234 = vsel %vm147, %v145, %v231
        %v235 = vsel %vm147, 0, %v233
        %v236 = vcosq.f32.pop %v234
        %v237 = vsinq.f32.pop %v234
        %vm238 = vweird.f32 %v145
        %v239 = vadd.s32 %v235, 3
        %v240 = vand.u32 %v239, 3
        %vm241 = vcmp.lt.s32.totalorder %v240, 2
        %vm242 = vcmp.eq.s32.totalorder %v240, 0
        %v243 = vxor.u32 %v237, 2147483648
        %v244 = vsel %vm242, %v236, %v243
        %vm245 = vcmp.eq.s32.totalorder %v240, 2
        %v246 = vxor.u32 %v236, 2147483648
        %v247 = vsel %vm245, %v246, %v237
        %v248 = vsel %vm241, %v244, %v247
        %v249 = vsel %vm238, nan, %v248
        %v250 = vand.u32 2147483647, %v145
        %vm251 = vcmp.le.f32.partialorder %v250, 0.7853982
        %vm252 = vcmp.lt.s32.totalorder %v145, 0
        %v253 = vand.u32 %v145, 2139095040
        %v254 = vshrl.u32 %v253, 23
        %v255 = vsub.s32 %v254, 127
        %v256 = vand.u32 2147483647, %v145
        %v257 = vand.u32 %v256, 8388607
        %v258 = vor.u32 %v257, 8388608
        %v259 = vsub.s32 0, %v258
        %v260 = vadd.s32 %v255, 1
        %vm261 = vcmp.gt.s32.totalorder %v260, 0
        %v262 = vsel %vm261, %v260, 0
        %v263 = vshrl.u32 %v262, 5
        %v264 = vand.u32 %v262, 31
        %v265 = vsub.s32 32, %v264
        %v266 = vshrl.u32 683565275, %v265
        %v267 = vshll.u32 683565275, %v264
        %v268 = vshrl.u32 2475754826, %v265
        %v269 = vor.u32 %v267, %v268
        %v270 = vshll.u32 2475754826, %v264
        %v271 = vshrl.u32 2131351028, %v265
        %v272 = vor.u32 %v270, %v271
        %v273 = vshll.u32 2131351028, %v264
        %v274 = vshrl.u32 2102212464, %v265
        %v275 = vor.u32 %v273, %v274
        %v276 = vshll.u32 2102212464, %v264
        %v277 = vshrl.u32 920167782, %v265
        %v278 = vor.u32 %v276, %v277
        %v279 = vshll.u32 920167782, %v264
        %v280 = vshrl.u32 1326507024, %v265
        %v281 = vor.u32 %v279, %v280
        %vm282 = vcmp.lt.s32.totalorder %v263, 1
        %vm283 = vcmp.lt.s32.totalorder %v263, 2
        %vm284 = vcmp.lt.s32.totalorder %v263, 3
        %vm285 = vcmp.lt.s32.totalorder %v263, 4
        %v286 = vsel %vm282, %v266, %v269
        %v287 = vsel %vm285, %v275, 2102212464
        %v288 = vsel %vm284, %v272, %v287
        %v289 = vsel %vm283, %v286, %v288
        %v290 = vsel %vm282, %v269, %v272
        %v291 = vsel %vm285, %v278, 920167782
        %v292 = vsel %vm284, %v275, %v291
        %v293 = vsel %vm283, %v290, %v292
        %v294 = vsel %vm282, %v272, %v275
        %v295 = vsel %vm285, %v281, 1326507024
        %v296 = vsel %vm284, %v278, %v295
        %v297 = vsel %vm283, %v294, %v296
        %v298 = vshll.u32 %v258, 8
        %v299 = vmul.u32.u64.compose %v298, %v297
        %v300 = vextract.low.u32 %v299
        %v301 = vextract.high.u32 %v299
        %v302 = vmul.u32.u64.compose %v298, %v293
        %v303 = vextract.low.u32 %v302
        %v304 = vextract.high.u32 %v302
        %v305 = vmul.u32 %v298, %v289
        %v306 = vadd.s32 %v301, %v303
        %vm307 = vc.u32 %v301, %v303
        %v308 = vadd.s32 %v304, 1
        %v309 = vsel %vm307, %v308, %v304
        %v310 = vadd.s32 %v305, %v309
        %v311 = vadd.s32 %v310, 536870912
        %v312 = vshrl.u32 %v311, 30
        %v313 = vshll.u32 %v312, 30
        %v314 = vsub.s32 %v310, %v313
        %vm315 = vcmp.lt.s32.totalorder %v314, 0
        %v316 = vsub.s32 0, %v314
        %v317 = vsel %vm315, %v316, %v314
        %v318 = vclz %v317
        %v319 = vsub.s32 %v318, 2
        %vm320 = vcmp.gt.s32.totalorder 0, %v319
        %v321 = vsel %vm320, 0, %v319
        %v322 = vsub.s32 32, %v321
        %v323 = vshll.u32 %v314, %v321
        %v324 = vshrl.u32 %v306, %v322
        %v325 = vor.u32 %v323, %v324
        %v326 = vsub.s32 4294967266, %v321
        %v327 = vadd.s32 %v326, 127
        %v328 = vshll.u32 %v327, 23
        %v329 = vor.u32 4788187, %v328
        %v330 = vand.u32 2147483647, %v329
        %v332 = vcvt.s32.f32 %v325
        %v333 = vmul.f32 %v332, %v330
        %v334 = vxor.u32 %v333, 2147483648
        %v335 = vsel %vm252, %v334, %v333
        %v336 = vsub.s32 4, %v312
        %v337 = vsel %vm252, %v336, %v312
        %v338 = vsel %vm251, %v145, %v335
        %v339 = vsel %vm251, 0, %v337
        %v340 = vcosq.f32.pop %v338
        %v341 = vsinq.f32.pop %v338
        %vm342 = vweird.f32 %v145
        %v343 = vand.u32 %v339, 3
        %vm344 = vcmp.lt.s32.totalorder %v343, 2
        %vm345 = vcmp.eq.s32.totalorder %v343, 0
        %v346 = vxor.u32 %v341, 2147483648
        %v347 = vsel %vm345, %v340, %v346
        %vm348 = vcmp.eq.s32.totalorder %v343, 2
        %v349 = vxor.u32 %v340, 2147483648
        %v350 = vsel %vm348, %v349, %v341
        %v351 = vsel %vm344, %v347, %v350
        %v352 = vsel %vm342, nan, %v351
        %v353 = vmul.f32 %v249, %v352
        %v354 = vadd.f32 %v353, %v353
        %v355 = vmul.f32 %v352, %v352
        %v356 = vmul.f32 %v249, %v249
        %v357 = vsub.f32 %v355, %v356
        %v359 = vrot.slane %v249, 1
        %v362 = vrot.slane %v352, 7
        %v365 = vrot.slane %v357, 6
        %v367 = vsel %vm142, 0.70710677, %v359
        %v368 = vsel %vm144, %v367, %v354
        %vm369 = vcmask 1042432
        %v370 = vsel %vm369, %v368, %v362
        %vm371 = vcmask 1043456
        %v372 = vsel %vm371, %v370, %v365
        %v373 = vmul.f32 %v372, 0.17958713
        %v374 = vmul.f32 %v373, 0.5
        %v375 = vmul.f32 %v249, 0.70710677
        %v376 = vlaneseq
        %v377 = vshrl.u32 %v376, 7
        %v378 = vsub.s32 1, %v377
        %v379 = vrot.slane %v375, %v378
        %v380 = vmul.f32 %v379, %v373
        %v381 = vmul.f32 %v352, 0.70710677
        %v382 = vlaneseq
        %v383 = vshrl.u32 %v382, 7
        %v384 = vsub.s32 1, %v383
        %v385 = vrot.slane %v381, %v384
        %v386 = vmul.f32 %v385, %v373
        %v387 = vlaneseq
        %v388 = vshrl.u32 %v387, 7
        %v389 = vsub.s32 0, %v388
        %v390 = vrot.slane %v375, %v389
        %v391 = vmul.f32 %v390, %v373
        %v392 = vmul.f32 %v249, %v359
        %v393 = vlaneseq
        %v394 = vshrl.u32 %v393, 7
        %v395 = vsub.s32 0, %v394
        %v396 = vrot.slane %v392, %v395
        %v397 = vmul.f32 %v396, %v373
        %v398 = vrot.slane %v352, 1
        %v400 = vmul.f32 %v249, %v398
        %v401 = vlaneseq
        %v402 = vshrl.u32 %v401, 7
        %v403 = vsub.s32 0, %v402
        %v404 = vrot.slane %v400, %v403
        %v405 = vmul.f32 %v404, %v373
        %v406 = vmul.f32 %v354, 0.70710677
        %v407 = vlaneseq
        %v408 = vshrl.u32 %v407, 7
        %v409 = vsub.s32 0, %v408
        %v410 = vrot.slane %v406, %v409
        %v411 = vmul.f32 %v410, %v373
        %v412 = vmul.f32 %v354, %v359
        %v413 = vlaneseq
        %v414 = vshrl.u32 %v413, 7
        %v415 = vsub.s32 0, %v414
        %v416 = vrot.slane %v412, %v415
        %v417 = vmul.f32 %v416, %v373
        %v418 = vmul.f32 %v354, %v398
        %v419 = vlaneseq
        %v420 = vshrl.u32 %v419, 7
        %v421 = vsub.s32 0, %v420
        %v422 = vrot.slane %v418, %v421
        %v423 = vmul.f32 %v422, %v373
        %v424 = vlaneseq
        %v425 = vshrl.u32 %v424, 7
        %v426 = vsub.s32 0, %v425
        %v427 = vrot.slane %v381, %v426
        %v428 = vmul.f32 %v427, %v373
        %v429 = vmul.f32 %v352, %v359
        %v430 = vlaneseq
        %v431 = vshrl.u32 %v430, 7
        %v432 = vsub.s32 0, %v431
        %v433 = vrot.slane %v429, %v432
        %v434 = vmul.f32 %v433, %v373
        %v435 = vmul.f32 %v352, %v398
        %v436 = vlaneseq
        %v437 = vshrl.u32 %v436, 7
        %v438 = vsub.s32 0, %v437
        %v439 = vrot.slane %v435, %v438
        %v440 = vmul.f32 %v439, %v373
        %v441 = vmul.f32 %v357, 0.70710677
        %v442 = vlaneseq
        %v443 = vshrl.u32 %v442, 7
        %v444 = vsub.s32 0, %v443
        %v445 = vrot.slane %v441, %v444
        %v446 = vmul.f32 %v445, %v373
        %v447 = vmul.f32 %v357, %v359
        %v448 = vlaneseq
        %v449 = vshrl.u32 %v448, 7
        %v450 = vsub.s32 0, %v449
        %v451 = vrot.slane %v447, %v450
        %v452 = vmul.f32 %v451, %v373
        %v453 = vmul.f32 %v357, %v398
        %v454 = vlaneseq
        %v455 = vshrl.u32 %v454, 7
        %v456 = vsub.s32 0, %v455
        %v457 = vrot.slane %v453, %v456
        %v458 = vmul.f32 %v457, %v373
        %v460 = vrot.slane %v380, 3
        %v463 = vrot.slane %v386, 6
        %v466 = vrot.slane %v391, 1
        %v469 = vrot.slane %v397, 4
        %v472 = vrot.slane %v405, 7
        %v475 = vrot.slane %v411, 2
        %v478 = vrot.slane %v417, 5
        %v481 = vrot.slane %v428, 3
        %v484 = vrot.slane %v434, 6
        %v487 = vrot.slane %v440, 1
        %v490 = vrot.slane %v446, 4
        %v493 = vrot.slane %v452, 7
        %v496 = vrot.slane %v458, 2
        %vm498 = vcmask 1044480
        %v499 = vsel %vm498, %v374, %v460
        %v500 = vsel %vm144, %v460, %v463
        %vm501 = vcmask 1046528
        %v502 = vsel %vm501, %v500, %v466
        %v503 = vsel %vm371, %v466, %v469
        %v504 = vsel %vm142, %v469, %v472
        %vm505 = vcmask 1045504
        %v506 = vsel %vm505, %v504, %v475
        %v507 = vsel %vm369, %v475, %v478
        %v508 = vsel %vm498, %v423, %v481
        %v509 = vsel %vm144, %v481, %v484
        %v510 = vsel %vm501, %v509, %v487
        %v511 = vsel %vm371, %v487, %v490
        %v512 = vsel %vm142, %v490, %v493
        %v513 = vsel %vm505, %v512, %v496
        %v514 = vsel %vm369, %v496, 0.0
        %515 = vxpose.xlu0.b32.start [1/16] %v499, 128
        %516 = vxpose.xlu0.b32.cont [2/16] %v502, 128
        %517 = vxpose.xlu0.b32.cont [3/16] %v503, 128
        %518 = vxpose.xlu0.b32.cont [4/16] %v506, 128
        %519 = vxpose.xlu0.b32.cont [5/16] %v507, 128
        %520 = vxpose.xlu0.b32.cont [6/16] %v508, 128
        %521 = vxpose.xlu0.b32.cont [7/16] %v510, 128
        %522 = vxpose.xlu0.b32.cont [8/16] %v511, 128
        %523 = vxpose.xlu0.b32.cont [9/16] %v513, 128
        %524 = vxpose.xlu0.b32.cont [10/16] %v514, 128
        %525 = vxpose.xlu0.b32.cont [11/16] 0.0, 128
        %526 = vxpose.xlu0.b32.cont [12/16] 0.0, 128
        %527 = vxpose.xlu0.b32.cont [13/16] 0.0, 128
        %528 = vxpose.xlu0.b32.cont [14/16] 0.0, 128
        %529 = vxpose.xlu0.b32.cont [15/16] 0.0, 128
        %530 = vxpose.xlu0.b32.end [16/16] 0.0, 128
        %v531 = vpop.trf.xlu0
        %v532 = vpop.trf.xlu0
        %v533 = vpop.trf.xlu0
        %v534 = vpop.trf.xlu0
        %v535 = vpop.trf.xlu0
        %v536 = vpop.trf.xlu0
        %v537 = vpop.trf.xlu0
        %v538 = vpop.trf.xlu0
        %v539 = vpop.trf.xlu0
        %v540 = vpop.trf.xlu0
        %v541 = vpop.trf.xlu0
        %v542 = vpop.trf.xlu0
        %v543 = vpop.trf.xlu0
        %v544 = vpop.trf.xlu0
        %v545 = vpop.trf.xlu0
        %v546 = vpop.trf.xlu0
        %vm547 = vcmask 613376
        %548 = vst.msk [vmem:[%s127] sm:$0xff] %vm547, %v531
        %549 = vst.msk [vmem:[%s127 + $0x8] sm:$0xff] %vm547, %v532
        %550 = vst.msk [vmem:[%s127 + $0x10] sm:$0xff] %vm547, %v533
        %551 = vst.msk [vmem:[%s127 + $0x18] sm:$0xff] %vm547, %v534
        %552 = vst.msk [vmem:[%s127 + $0x20] sm:$0xff] %vm547, %v535
        %553 = vst.msk [vmem:[%s127 + $0x28] sm:$0xff] %vm547, %v536
        %554 = vst.msk [vmem:[%s127 + $0x30] sm:$0xff] %vm547, %v537
        %555 = vst.msk [vmem:[%s127 + $0x38] sm:$0xff] %vm547, %v538
        %556 = vst.msk [vmem:[%s127 + $0x40] sm:$0xff] %vm547, %v539
        %557 = vst.msk [vmem:[%s127 + $0x48] sm:$0xff] %vm547, %v540
        %558 = vst.msk [vmem:[%s127 + $0x50] sm:$0xff] %vm547, %v541
        %559 = vst.msk [vmem:[%s127 + $0x58] sm:$0xff] %vm547, %v542
        %560 = vst.msk [vmem:[%s127 + $0x60] sm:$0xff] %vm547, %v543
        %561 = vst.msk [vmem:[%s127 + $0x68] sm:$0xff] %vm547, %v544
        %562 = vst.msk [vmem:[%s127 + $0x70] sm:$0xff] %vm547, %v545
        %563 = vst.msk [vmem:[%s127 + $0x78] sm:$0xff] %vm547, %v546
        %s564 = sand.u32 %s49, 1
        %s565 = sand.u32 %s49, 1
        %s566 = smul.addr %s565, 128
        %s567 = scalar_lea.vmem [#allocation4], %s566
        // Predicated region
        $region29: #{tpu_custom_call.1} parent=23 // pred_check
          %p568 = pneg %p59
        $region30: #{tpu_custom_call.1} parent=23 // pred_check_branch
          %570 = sbr.rel (%p568) target = $region32
        $region31: #{tpu_custom_call.1} parent=23 // pred_region
          %s571 = smul.u32 16, %s15
          %s572 = ssub.s32 25, %s571
          %p573 = scmp.lt.s32.totalorder %s572, 16
          %s574 = scalar_select %p573, %s572, 16
          %s575 = smul.u32 128, %s574
          %p576 = scmp.ne.s32.totalorder 0, %s575
          %s577 = smul.addr %s571, 8
          %s578 = scalar_lea.vmem %s1, %s577
          // Predicated region
          $region33: #{tpu_custom_call.1} parent=31 // pred_check
            %p579 = pneg %p576
          $region34: #{tpu_custom_call.1} parent=31 // pred_check_branch
            %581 = sbr.rel (%p579) target = $region36
          $region35: #{tpu_custom_call.1} parent=31 // pred_region
            // Predicated region
            $region37: #{tpu_custom_call.1} parent=35 // pred_check
              _
            $region38: #{tpu_custom_call.1} parent=35 // pred_check_branch
              %583 = sbr.rel (0) target = $region40
            $region39: #{tpu_custom_call.1} parent=35 // pred_region
              // Predicated region
              $region59: #{tpu_custom_call.1} parent=39 // pred_check
                _
              $region60: #{tpu_custom_call.1} parent=39 // pred_check_branch
                %662 = sbr.rel (0) target = $region62
              $region61: #{tpu_custom_call.1} parent=39 // pred_region
                %s663 = sshrl.u32 %s574, 4
                // While loop
                $region63: #{tpu_custom_call.1} parent=61 // loop_pre_header
                  _
                $region64: #{tpu_custom_call.1} parent=61 // loop_header
                  %s665 = sphi 0, %s667
                  %p666 = scmp.ge.s32.totalorder %s665, %s663
                  %s670 = sphi 0, %s707
                  %s671 = sphi %s567, %s710
                  %s672 = sphi %s578, %s711
                $region65: #{tpu_custom_call.1} parent=61 // loop_header_branch
                  %669 = sbr.rel (%p666) target = $region69
                $region66: #{tpu_custom_call.1} parent=61 // loop_body
                  %v673 = vld [vmem:[%s671] sm:$0xff]
                  %674 = vst [vmem:[%s672] sm:$0xff] %v673
                  %v675 = vld [vmem:[%s671 + $0x8] sm:$0xff]
                  %676 = vst [vmem:[%s672 + $0x8] sm:$0xff] %v675
                  %v677 = vld [vmem:[%s671 + $0x10] sm:$0xff]
                  %678 = vst [vmem:[%s672 + $0x10] sm:$0xff] %v677
                  %v679 = vld [vmem:[%s671 + $0x18] sm:$0xff]
                  %680 = vst [vmem:[%s672 + $0x18] sm:$0xff] %v679
                  %v681 = vld [vmem:[%s671 + $0x20] sm:$0xff]
                  %682 = vst [vmem:[%s672 + $0x20] sm:$0xff] %v681
                  %v683 = vld [vmem:[%s671 + $0x28] sm:$0xff]
                  %684 = vst [vmem:[%s672 + $0x28] sm:$0xff] %v683
                  %v685 = vld [vmem:[%s671 + $0x30] sm:$0xff]
                  %686 = vst [vmem:[%s672 + $0x30] sm:$0xff] %v685
                  %v687 = vld [vmem:[%s671 + $0x38] sm:$0xff]
                  %688 = vst [vmem:[%s672 + $0x38] sm:$0xff] %v687
                  %v689 = vld [vmem:[%s671 + $0x40] sm:$0xff]
                  %690 = vst [vmem:[%s672 + $0x40] sm:$0xff] %v689
                  %v691 = vld [vmem:[%s671 + $0x48] sm:$0xff]
                  %692 = vst [vmem:[%s672 + $0x48] sm:$0xff] %v691
                  %v693 = vld [vmem:[%s671 + $0x50] sm:$0xff]
                  %694 = vst [vmem:[%s672 + $0x50] sm:$0xff] %v693
                  %v695 = vld [vmem:[%s671 + $0x58] sm:$0xff]
                  %696 = vst [vmem:[%s672 + $0x58] sm:$0xff] %v695
                  %v697 = vld [vmem:[%s671 + $0x60] sm:$0xff]
                  %698 = vst [vmem:[%s672 + $0x60] sm:$0xff] %v697
                  %v699 = vld [vmem:[%s671 + $0x68] sm:$0xff]
                  %700 = vst [vmem:[%s672 + $0x68] sm:$0xff] %v699
                  %v701 = vld [vmem:[%s671 + $0x70] sm:$0xff]
                  %702 = vst [vmem:[%s672 + $0x70] sm:$0xff] %v701
                  %v703 = vld [vmem:[%s671 + $0x78] sm:$0xff]
                  %704 = vst [vmem:[%s672 + $0x78] sm:$0xff] %v703
                  %s705 = sadd.s32 1, %s670
                  %p706 = scmp.ge.s32.totalorder %s705, %s663
                  %s707 = scalar_select %p706, 0, %s705
                  %s708 = smul.u32 %s707, 128
                  %s709 = smul.u32 %s707, 128
                  %s710 = scalar_lea.vmem %s567, %s708 [#allocation4]
                  %s711 = scalar_lea.vmem %s578, %s709
                $region67: #{tpu_custom_call.1} parent=61 // loop_footer
                  %s667 = sadd.s32 %s665, 1
                $region68: #{tpu_custom_call.1} parent=61 // loop_footer_branch
                  %664 = sbr.rel target = $region64
                $region69: #{tpu_custom_call.1} parent=61 // loop_exit
                  _
                %s712 = sshrl.u32 %s574, 4
                %s713 = sand.u32 %s574, 15
                %s714 = smul.u32 %s712, 16
                %s715 = smul.u32 8, %s714
                %s716 = scalar_lea.vmem %s567, %s715 [#allocation4]
                %s717 = smul.u32 8, %s714
                %s718 = scalar_lea.vmem %s578, %s717
                // While loop
                $region70: #{tpu_custom_call.1} parent=61 // loop_pre_header
                  _
                $region71: #{tpu_custom_call.1} parent=61 // loop_header
                  %s720 = sphi 0, %s722
                  %p721 = scmp.ge.s32.totalorder %s720, %s713
                  %s725 = sphi 0, %s732
                  %s726 = sphi %s716, %s735
                  %s727 = sphi %s718, %s736
                $region72: #{tpu_custom_call.1} parent=61 // loop_header_branch
                  %724 = sbr.rel (%p721) target = $region76
                $region73: #{tpu_custom_call.1} parent=61 // loop_body
                  %v728 = vld [vmem:[%s726] sm:$0xff]
                  %729 = vst [vmem:[%s727] sm:$0xff] %v728
                  %s730 = sadd.s32 1, %s725
                  %p731 = scmp.ge.s32.totalorder %s730, %s713
                  %s732 = scalar_select %p731, 0, %s730
                  %s733 = smul.u32 %s732, 8
                  %s734 = smul.u32 %s732, 8
                  %s735 = scalar_lea.vmem %s716, %s733 [#allocation4]
                  %s736 = scalar_lea.vmem %s718, %s734
                $region74: #{tpu_custom_call.1} parent=61 // loop_footer
                  %s722 = sadd.s32 %s720, 1
                $region75: #{tpu_custom_call.1} parent=61 // loop_footer_branch
                  %719 = sbr.rel target = $region71
                $region76: #{tpu_custom_call.1} parent=61 // loop_exit
                  _
              $region62: #{tpu_custom_call.1} parent=39 // pred_fallthru
                _
              // Predicated region
              $region77: #{tpu_custom_call.1} parent=39 // pred_check
                _
              $region78: #{tpu_custom_call.1} parent=39 // pred_check_branch
                %738 = sbr.rel target = $region80
              $region79: #{tpu_custom_call.1} parent=39 // pred_region
                _
              $region80: #{tpu_custom_call.1} parent=39 // pred_fallthru
                _
            $region40: #{tpu_custom_call.1} parent=35 // pred_fallthru
              _
            // Predicated region
            $region41: #{tpu_custom_call.1} parent=35 // pred_check
              _
            $region42: #{tpu_custom_call.1} parent=35 // pred_check_branch
              %585 = sbr.rel target = $region44
            $region43: #{tpu_custom_call.1} parent=35 // pred_region
              %s587 = sshrl.u32 %s574, 4
              // While loop
              $region45: #{tpu_custom_call.1} parent=43 // loop_pre_header
                _
              $region46: #{tpu_custom_call.1} parent=43 // loop_header
                %s589 = sphi 0, %s591
                %p590 = scmp.ge.s32.totalorder %s589, %s587
                %s594 = sphi 0, %s631
                %s595 = sphi %s567, %s634
                %s596 = sphi %s578, %s635
              $region47: #{tpu_custom_call.1} parent=43 // loop_header_branch
                %593 = sbr.rel (%p590) target = $region51
              $region48: #{tpu_custom_call.1} parent=43 // loop_body
                %v597 = vld [vmem:[%s595] sm:$0xff]
                %598 = vst [vmem:[%s596] sm:$0xff] %v597
                %v599 = vld [vmem:[%s595 + $0x8] sm:$0xff]
                %600 = vst [vmem:[%s596 + $0x8] sm:$0xff] %v599
                %v601 = vld [vmem:[%s595 + $0x10] sm:$0xff]
                %602 = vst [vmem:[%s596 + $0x10] sm:$0xff] %v601
                %v603 = vld [vmem:[%s595 + $0x18] sm:$0xff]
                %604 = vst [vmem:[%s596 + $0x18] sm:$0xff] %v603
                %v605 = vld [vmem:[%s595 + $0x20] sm:$0xff]
                %606 = vst [vmem:[%s596 + $0x20] sm:$0xff] %v605
                %v607 = vld [vmem:[%s595 + $0x28] sm:$0xff]
                %608 = vst [vmem:[%s596 + $0x28] sm:$0xff] %v607
                %v609 = vld [vmem:[%s595 + $0x30] sm:$0xff]
                %610 = vst [vmem:[%s596 + $0x30] sm:$0xff] %v609
                %v611 = vld [vmem:[%s595 + $0x38] sm:$0xff]
                %612 = vst [vmem:[%s596 + $0x38] sm:$0xff] %v611
                %v613 = vld [vmem:[%s595 + $0x40] sm:$0xff]
                %614 = vst [vmem:[%s596 + $0x40] sm:$0xff] %v613
                %v615 = vld [vmem:[%s595 + $0x48] sm:$0xff]
                %616 = vst [vmem:[%s596 + $0x48] sm:$0xff] %v615
                %v617 = vld [vmem:[%s595 + $0x50] sm:$0xff]
                %618 = vst [vmem:[%s596 + $0x50] sm:$0xff] %v617
                %v619 = vld [vmem:[%s595 + $0x58] sm:$0xff]
                %620 = vst [vmem:[%s596 + $0x58] sm:$0xff] %v619
                %v621 = vld [vmem:[%s595 + $0x60] sm:$0xff]
                %622 = vst [vmem:[%s596 + $0x60] sm:$0xff] %v621
                %v623 = vld [vmem:[%s595 + $0x68] sm:$0xff]
                %624 = vst [vmem:[%s596 + $0x68] sm:$0xff] %v623
                %v625 = vld [vmem:[%s595 + $0x70] sm:$0xff]
                %626 = vst [vmem:[%s596 + $0x70] sm:$0xff] %v625
                %v627 = vld [vmem:[%s595 + $0x78] sm:$0xff]
                %628 = vst [vmem:[%s596 + $0x78] sm:$0xff] %v627
                %s629 = sadd.s32 1, %s594
                %p630 = scmp.ge.s32.totalorder %s629, %s587
                %s631 = scalar_select %p630, 0, %s629
                %s632 = smul.u32 %s631, 128
                %s633 = smul.u32 %s631, 128
                %s634 = scalar_lea.vmem %s567, %s632 [#allocation4]
                %s635 = scalar_lea.vmem %s578, %s633
              $region49: #{tpu_custom_call.1} parent=43 // loop_footer
                %s591 = sadd.s32 %s589, 1
              $region50: #{tpu_custom_call.1} parent=43 // loop_footer_branch
                %588 = sbr.rel target = $region46
              $region51: #{tpu_custom_call.1} parent=43 // loop_exit
                _
              %s636 = sshrl.u32 %s574, 4
              %s637 = sand.u32 %s574, 15
              %s638 = smul.u32 %s636, 16
              %s639 = smul.u32 8, %s638
              %s640 = scalar_lea.vmem %s567, %s639 [#allocation4]
              %s641 = smul.u32 8, %s638
              %s642 = scalar_lea.vmem %s578, %s641
              // While loop
              $region52: #{tpu_custom_call.1} parent=43 // loop_pre_header
                _
              $region53: #{tpu_custom_call.1} parent=43 // loop_header
                %s644 = sphi 0, %s646
                %p645 = scmp.ge.s32.totalorder %s644, %s637
                %s649 = sphi 0, %s656
                %s650 = sphi %s640, %s659
                %s651 = sphi %s642, %s660
              $region54: #{tpu_custom_call.1} parent=43 // loop_header_branch
                %648 = sbr.rel (%p645) target = $region58
              $region55: #{tpu_custom_call.1} parent=43 // loop_body
                %v652 = vld [vmem:[%s650] sm:$0xff]
                %653 = vst [vmem:[%s651] sm:$0xff] %v652
                %s654 = sadd.s32 1, %s649
                %p655 = scmp.ge.s32.totalorder %s654, %s637
                %s656 = scalar_select %p655, 0, %s654
                %s657 = smul.u32 %s656, 8
                %s658 = smul.u32 %s656, 8
                %s659 = scalar_lea.vmem %s640, %s657 [#allocation4]
                %s660 = scalar_lea.vmem %s642, %s658
              $region56: #{tpu_custom_call.1} parent=43 // loop_footer
                %s646 = sadd.s32 %s644, 1
              $region57: #{tpu_custom_call.1} parent=43 // loop_footer_branch
                %643 = sbr.rel target = $region53
              $region58: #{tpu_custom_call.1} parent=43 // loop_exit
                _
            $region44: #{tpu_custom_call.1} parent=35 // pred_fallthru
              _
          $region36: #{tpu_custom_call.1} parent=31 // pred_fallthru
            _
          %739 = vnop
        $region32: #{tpu_custom_call.1} parent=23 // pred_fallthru
          _
      $region24: #{tpu_custom_call.1} parent=5 // pred_fallthru
        _
      %p740 = scmp.le.s32.totalorder 2, %s10
      // Predicated region
      $region81: #{tpu_custom_call.1} parent=5 // pred_check
        %p741 = pneg %p740
      $region82: #{tpu_custom_call.1} parent=5 // pred_check_branch
        %743 = sbr.rel (%p741) target = $region84
      $region83: #{tpu_custom_call.1} parent=5 // pred_region
        %s744 = ssub.s32 %s10, 2
        // Predicated region
        $region85: #{tpu_custom_call.1} parent=83 // pred_check
          %p745 = pneg %p65
        $region86: #{tpu_custom_call.1} parent=83 // pred_check_branch
          %747 = sbr.rel (%p745) target = $region88
        $region87: #{tpu_custom_call.1} parent=83 // pred_region
          %s748 = sand.u32 %s50, 1
          %s749 = sand.u32 %s50, 1
          %s750 = smul.addr %s749, 128
          %s751 = scalar_lea.vmem [#allocation4], %s750
        $region88: #{tpu_custom_call.1} parent=83 // pred_fallthru
          _
      $region84: #{tpu_custom_call.1} parent=5 // pred_fallthru
        _
    $region6: #{tpu_custom_call.1} parent=1 // loop_footer
      %s14 = sadd.s32 1, %s10
    $region7: #{tpu_custom_call.1} parent=1 // loop_footer_branch
      %9 = sbr.rel target = $region3
    $region8: #{tpu_custom_call.1} parent=1 // loop_exit
      _
    %752 = vsyncpa [#allocation3], 1
    %s753 = scalar_lea.sflag [#allocation3], 1
    %754 = vsyncpa %s753, 1

</llo_original>
